<compile_context>
chip_gen: v7x
topology: tpu7x:2x2x1
jax: 0.10.0
libtpu: 0.0.40
codegen_flags: <defaults>
</compile_context>

<pallas_src>
import jax
import jax.numpy as jnp
from jax import lax
from jax.experimental import pallas as pl
from jax.experimental.pallas import tpu as pltpu

EPS = 1e-5
_CDT = jnp.bfloat16          # MXU operand / inter-stage activation dtype


# --------------------------------------------------------------------------
# Pallas kernels
# --------------------------------------------------------------------------

def _pointwise_kernel(x_ref, w_ref, s_ref, b_ref, o_ref):
    # Fused 1x1 conv + BN(eval) + ReLU:  relu((x @ w) * s + b)
    # x: (tm, Cin) bf16   w: (Cin, Cout) bf16   s,b: (1, Cout) f32
    acc = jnp.dot(x_ref[...], w_ref[...], preferred_element_type=jnp.float32)
    y = acc * s_ref[...] + b_ref[...]
    o_ref[...] = jnp.maximum(y, 0.0).astype(o_ref.dtype)


def _conv3x3_kernel(x_ref, w_ref, s_ref, b_ref, o_ref):
    # Fused 3x3 conv (stride 1) + BN(eval) + ReLU on one row tile.
    #   x_ref: (Hp, Wp, Cin)  full halo-padded image of this batch element
    #   w_ref: (9*Cin, Cout)  taps flattened (dy, dx, ci) along the K axis
    #   s_ref, b_ref: (1, Cout)
    #   o_ref: (th, W, Cout)
    th, wout, cout = o_ref.shape
    cin = x_ref.shape[-1]
    row0 = pl.multiple_of(pl.program_id(1) * th, th)
    xwin = x_ref[pl.ds(row0, th + 2)]                 # (th+2, W+2, Cin)

    # Build the im2col patch in VMEM (no HBM traffic) and run ONE matmul.
    taps = []
    for dy in range(3):
        for dx in range(3):
            t = xwin[dy:dy + th, dx:dx + wout, :]     # (th, W, Cin) static slice
            taps.append(t.reshape(th * wout, cin))    # collapse leading dims
    patch = jnp.concatenate(taps, axis=-1)            # (th*W, 9*Cin)

    acc = jnp.dot(patch, w_ref[...], preferred_element_type=jnp.float32)
    y = jnp.maximum(acc * s_ref[...] + b_ref[...], 0.0)
    o_ref[...] = y.reshape(th, wout, cout).astype(o_ref.dtype)


# --------------------------------------------------------------------------
# pallas_call wrappers
# --------------------------------------------------------------------------

def _round_up(x, m):
    return ((x + m - 1) // m) * m


def _pick_tm(m, cap=1024):
    # Largest row tile under `cap` that keeps >= 2 grid blocks (v7x megacore)
    # and stays sublane aligned (16 works for both f32 and bf16).
    if m <= 16:
        return _round_up(max(m, 1), 8)
    return min(cap, _round_up((m + 1) // 2, 16))


def pointwise_conv_bn_relu(x_flat, w, scale, bias, out_dtype):
    # relu((x @ w) * scale + bias);  x: (M, Cin)  w: (Cin, Cout)
    m, cin = x_flat.shape
    cout = w.shape[1]
    tm = _pick_tm(m)
    m_pad = _round_up(m, tm)
    if m_pad != m:
        x_flat = jnp.pad(x_flat, ((0, m_pad - m), (0, 0)))
    out = pl.pallas_call(
        _pointwise_kernel,
        out_shape=jax.ShapeDtypeStruct((m_pad, cout), out_dtype),
        grid_spec=pltpu.PrefetchScalarGridSpec(
            num_scalar_prefetch=0,
            grid=(m_pad // tm,),
            in_specs=[
                pl.BlockSpec((tm, cin), lambda i: (i, 0)),
                pl.BlockSpec((cin, cout), lambda i: (0, 0)),
                pl.BlockSpec((1, cout), lambda i: (0, 0)),
                pl.BlockSpec((1, cout), lambda i: (0, 0)),
            ],
            out_specs=pl.BlockSpec((tm, cout), lambda i: (i, 0)),
        ),
        compiler_params=pltpu.CompilerParams(
            dimension_semantics=("parallel",)),
    )(x_flat, w, scale.reshape(1, cout).astype(jnp.float32),
      bias.reshape(1, cout).astype(jnp.float32))
    return out[:m] if m_pad != m else out


def conv3x3_bn_relu(x_nhwc, w_hwio, scale, bias, pad_value, out_dtype):
    # relu(conv3x3(pad(x, pad_value), w) * scale + bias), stride 1, padding 1.
    # pad_value is a per-channel (Cin,) halo value (zeros for a plain conv).
    n, h, w, cin = x_nhwc.shape
    cout = w_hwio.shape[-1]
    hq = _round_up(h, 8)
    th = next(t for t in (32, 16, 8) if hq % t == 0)

    # Halo-padded image with per-channel pad value (built once, read once).
    xp = jnp.broadcast_to(pad_value.astype(_CDT), (n, hq + 2, w + 2, cin))
    xp = xp.at[:, 1:h + 1, 1:w + 1, :].set(x_nhwc.astype(_CDT))
    w9 = w_hwio.reshape(9 * cin, cout).astype(_CDT)   # (dy, dx, ci) flattened

    out = pl.pallas_call(
        _conv3x3_kernel,
        out_shape=jax.ShapeDtypeStruct((n, hq, w, cout), out_dtype),
        grid_spec=pltpu.PrefetchScalarGridSpec(
            num_scalar_prefetch=0,
            grid=(n, hq // th),
            in_specs=[
                # Full padded image of batch b stays resident across row tiles.
                pl.BlockSpec((None, hq + 2, w + 2, cin),
                             lambda b, r: (b, 0, 0, 0)),
                pl.BlockSpec((9 * cin, cout), lambda b, r: (0, 0)),
                pl.BlockSpec((1, cout), lambda b, r: (0, 0)),
                pl.BlockSpec((1, cout), lambda b, r: (0, 0)),
            ],
            out_specs=pl.BlockSpec((None, th, w, cout),
                                   lambda b, r: (b, r, 0, 0)),
        ),
        compiler_params=pltpu.CompilerParams(
            dimension_semantics=("parallel", "parallel")),
    )(xp, w9, scale.reshape(1, cout).astype(jnp.float32),
      bias.reshape(1, cout).astype(jnp.float32))
    return out[:, :h] if hq != h else out


# --------------------------------------------------------------------------
# Parameter setup (deterministic, synthetic)
# --------------------------------------------------------------------------

def _bn_affine(key, c):
    k1, k2, k3, k4 = jax.random.split(key, 4)
    gamma = jax.random.uniform(k1, (c,), jnp.float32, 0.5, 1.5)
    beta = jax.random.normal(k2, (c,), jnp.float32) * 0.1
    mean = jax.random.normal(k3, (c,), jnp.float32) * 0.1
    var = jax.random.uniform(k4, (c,), jnp.float32, 0.5, 1.5)
    scale = gamma / jnp.sqrt(var + EPS)
    shift = beta - mean * scale
    return scale, shift


def init_params(key, up_ch, skip_ch, last=False):
    assert up_ch % 2 == 0
    ni = up_ch // 2 + skip_ch
    nf = ni // 2
    nf_out = nf if not last else nf - 1
    ks = jax.random.split(key, 10)
    return {
        # ExtraUp: Conv2d(up_ch, 2*up_ch, k=1) + BN + ReLU + PixelShuffle(2)
        'w_up': jax.random.normal(ks[0], (up_ch, 2 * up_ch), jnp.float32) * 0.1,
        'b_up': jax.random.normal(ks[1], (2 * up_ch,), jnp.float32) * 0.1,
        'bn_up': _bn_affine(ks[2], 2 * up_ch),
        # body
        'bn1': _bn_affine(ks[3], ni),
        'w1': jax.random.normal(ks[4], (3, 3, ni, nf), jnp.float32) * 0.1,
        'b1': jax.random.normal(ks[5], (nf,), jnp.float32) * 0.1,
        'bn2': _bn_affine(ks[6], nf),
        'w2': jax.random.normal(ks[7], (3, 3, nf, nf_out), jnp.float32) * 0.1,
        'b2': jax.random.normal(ks[8], (nf_out,), jnp.float32) * 0.1,
        'bn3': _bn_affine(ks[9], nf_out),
    }


# --------------------------------------------------------------------------
# DecoderLayer forward (NCHW in / NCHW out, kernels run in NHWC)
# --------------------------------------------------------------------------

def decoder_layer_forward(x_nchw, skip_nchw, p):
    n, up_ch, h, w = x_nchw.shape
    _, skip_ch, hs, ws = skip_nchw.shape

    x = jnp.transpose(x_nchw, (0, 2, 3, 1))        # NHWC
    skip = jnp.transpose(skip_nchw, (0, 2, 3, 1))  # NHWC

    # ---- ExtraUp: 1x1 conv + BN + ReLU (fused Pallas kernel, bf16 out) ----
    s_up, sh_up = p['bn_up']
    eff_b_up = s_up * p['b_up'] + sh_up
    y = pointwise_conv_bn_relu(x.reshape(n * h * w, up_ch).astype(_CDT),
                               p['w_up'].astype(_CDT), s_up, eff_b_up,
                               out_dtype=_CDT)
    y = y.reshape(n, h, w, 2 * up_ch)

    # TODO(synk): fuse pixel-shuffle / nearest-resize / concat into conv1's
    # input index_map via scalar-prefetched row/col tables to save these XLA
    # passes (kept as cheap layout glue here).
    c = up_ch // 2
    y = y.reshape(n, h, w, c, 2, 2).transpose(0, 1, 4, 2, 5, 3)
    y = y.reshape(n, 2 * h, 2 * w, c)
    rh = (jnp.arange(hs) * (2 * h)) // hs
    rw = (jnp.arange(ws) * (2 * w)) // ws
    y = y[:, rh][:, :, rw]                          # (N, Hs, Ws, C)
    cat = jnp.concatenate([y, skip.astype(_CDT)], axis=-1)   # (N, Hs, Ws, ni)

    # ---- body ----
    # BN1 folded into conv1: conv(BN1(x), w1) == conv(x padded with -sh1/s1,
    # w1*s1) + sum_taps(sh1 . w1); BN2 + ReLU fused into the same kernel.
    s1, sh1 = p['bn1']
    s2, sh2 = p['bn2']
    w1s = p['w1'] * s1[None, None, :, None]             # scale along Cin
    const1 = jnp.einsum('hwic,i->c', p['w1'], sh1)      # constant tap term
    pad1 = -sh1 / s1                                    # halo value in pre-BN space
    z = conv3x3_bn_relu(cat, w1s, s2, s2 * (p['b1'] + const1) + sh2,
                        pad1, out_dtype=_CDT)

    # Conv2d(nf, nf_out, 3, pad=1) + BN3 + ReLU (fused, zero halo, f32 out)
    s3, sh3 = p['bn3']
    z = conv3x3_bn_relu(z, p['w2'], s3, s3 * p['b2'] + sh3,
                        jnp.zeros((p['w2'].shape[2],), jnp.float32),
                        out_dtype=jnp.float32)

    return jnp.transpose(z, (0, 3, 1, 2))           # back to NCHW


# --------------------------------------------------------------------------
# Pure-JAX f32 reference (HIGHEST precision) for a sanity check
# --------------------------------------------------------------------------

def reference_forward(x_nchw, skip_nchw, p):
    x = jnp.transpose(x_nchw, (0, 2, 3, 1))
    skip = jnp.transpose(skip_nchw, (0, 2, 3, 1))
    n, h, w, up_ch = x.shape
    hs, ws = skip.shape[1], skip.shape[2]

    y = jnp.einsum('nhwc,cf->nhwf', x, p['w_up'],
                   precision=lax.Precision.HIGHEST) + p['b_up']
    s, sh = p['bn_up']
    y = jax.nn.relu(y * s + sh)
    c = up_ch // 2
    y = y.reshape(n, h, w, c, 2, 2).transpose(0, 1, 4, 2, 5, 3)
    y = y.reshape(n, 2 * h, 2 * w, c)
    rh = (jnp.arange(hs) * (2 * h)) // hs
    rw = (jnp.arange(ws) * (2 * w)) // ws
    y = y[:, rh][:, :, rw]
    cat = jnp.concatenate([y, skip], axis=-1)
    s1, sh1 = p['bn1']
    z = cat * s1 + sh1
    z = lax.conv_general_dilated(z, p['w1'], (1, 1), 'SAME',
                                 dimension_numbers=('NHWC', 'HWIO', 'NHWC'),
                                 precision=lax.Precision.HIGHEST) + p['b1']
    s2, sh2 = p['bn2']
    z = jax.nn.relu(z * s2 + sh2)
    z = lax.conv_general_dilated(z, p['w2'], (1, 1), 'SAME',
                                 dimension_numbers=('NHWC', 'HWIO', 'NHWC'),
                                 precision=lax.Precision.HIGHEST) + p['b2']
    s3, sh3 = p['bn3']
    z = jax.nn.relu(z * s3 + sh3)
    return jnp.transpose(z, (0, 3, 1, 2))


# --------------------------------------------------------------------------

if __name__ == "__main__":
    key = jax.random.PRNGKey(0)
    up_ch, skip_ch, last = 8, 4, False
    N, H, W = 2, 8, 8          # x spatial
    Hs, Ws = 16, 16            # skip spatial (ExtraUp upsamples x to this)

    k_x, k_skip, k_p = jax.random.split(key, 3)
    x = jax.random.normal(k_x, (N, up_ch, H, W), jnp.float32)
    skip = jax.random.normal(k_skip, (N, skip_ch, Hs, Ws), jnp.float32)
    params = init_params(k_p, up_ch, skip_ch, last=last)

    out = decoder_layer_forward(x, skip, params)
    out = jax.block_until_ready(out)

    ni = up_ch // 2 + skip_ch
    nf = ni // 2
    nf_out = nf if not last else nf - 1
    assert out.shape == (N, nf_out, Hs, Ws), out.shape
    assert out.dtype == jnp.float32

    ref = reference_forward(x, skip, params)
    assert bool(jnp.all(jnp.isfinite(out)))
    # Tolerance accounts for bf16 MXU operands / bf16 inter-stage activations
    # vs. the f32 HIGHEST-precision reference.
    assert jnp.allclose(out, ref, rtol=3e-2, atol=3e-2), \
        float(jnp.max(jnp.abs(out - ref)))

    print("KERNEL_OK")
</pallas_src>

<mosaic_0001>
module attributes {stable_mosaic.version = 11 : i64} {
  func.func @_pointwise_kernel(%arg0: i32, %arg1: memref<64x8xbf16, #tpu.memory_space<vmem>>, %arg2: memref<8x16xbf16, #tpu.memory_space<vmem>>, %arg3: memref<1x16xf32, #tpu.memory_space<vmem>>, %arg4: memref<1x16xf32, #tpu.memory_space<vmem>>, %arg5: memref<64x16xbf16, #tpu.memory_space<vmem>>) attributes {dimension_semantics = [#tpu.dimension_semantics<parallel>], iteration_bounds = array<i64: 2>, scalar_prefetch = 0 : i64, scratch_operands = 0 : i64, tpu.core_type = #tpu.core_type<tc>, window_params = [{transform_indices = @transform_0, window_bounds = array<i64: 64, 8>}, {pipeline_mode = #tpu.pipeline_mode<synchronous>, transform_indices = @transform_1, window_bounds = array<i64: 8, 16>}, {pipeline_mode = #tpu.pipeline_mode<synchronous>, transform_indices = @transform_2, window_bounds = array<i64: 1, 16>}, {pipeline_mode = #tpu.pipeline_mode<synchronous>, transform_indices = @transform_3, window_bounds = array<i64: 1, 16>}, {transform_indices = @transform_4, window_bounds = array<i64: 64, 16>}]} {
    %c0 = arith.constant 0 : index
    %c0_0 = arith.constant 0 : index
    %0 = vector.load %arg1[%c0, %c0_0] : memref<64x8xbf16, #tpu.memory_space<vmem>>, vector<64x8xbf16>
    %c0_1 = arith.constant 0 : index
    %c0_2 = arith.constant 0 : index
    %1 = vector.load %arg2[%c0_1, %c0_2] : memref<8x16xbf16, #tpu.memory_space<vmem>>, vector<8x16xbf16>
    %cst = arith.constant dense<0.000000e+00> : vector<64x16xf32>
    %2 = tpu.matmul %0, %1, %cst {dimension_numbers = #tpu.dot_dimension_numbers<[1], [0], [0], [1], [0, 0, 1, 1], [], []>} : vector<64x8xbf16>, vector<8x16xbf16>, vector<64x16xf32> -> vector<64x16xf32>
    %c0_3 = arith.constant 0 : index
    %c0_4 = arith.constant 0 : index
    %3 = vector.load %arg3[%c0_3, %c0_4] : memref<1x16xf32, #tpu.memory_space<vmem>>, vector<1x16xf32>
    %4 = vector.broadcast %3 : vector<1x16xf32> to vector<64x16xf32>
    %5 = arith.mulf %2, %4 : vector<64x16xf32>
    %c0_5 = arith.constant 0 : index
    %c0_6 = arith.constant 0 : index
    %6 = vector.load %arg4[%c0_5, %c0_6] : memref<1x16xf32, #tpu.memory_space<vmem>>, vector<1x16xf32>
    %7 = vector.broadcast %6 : vector<1x16xf32> to vector<64x16xf32>
    %8 = arith.addf %5, %7 : vector<64x16xf32>
    %cst_7 = arith.constant 0.000000e+00 : f32
    %9 = vector.broadcast %cst_7 : f32 to vector<64x16xf32>
    %10 = arith.maximumf %8, %9 : vector<64x16xf32>
    %11 = arith.truncf %10 : vector<64x16xf32> to vector<64x16xbf16>
    %c0_8 = arith.constant 0 : index
    %c0_9 = arith.constant 0 : index
    %12 = vector.load %arg5[%c0_8, %c0_9] : memref<64x16xbf16, #tpu.memory_space<vmem>>, vector<64x16xbf16>
    tpu.vector_store %arg5[%c0_8, %c0_9], %11 {strides = array<i32>} : memref<64x16xbf16, #tpu.memory_space<vmem>>, vector<64x16xbf16>,
    return
  }
  func.func @transform_0(%arg0: i32) -> (i32, i32) {
    %c0_i32 = arith.constant 0 : i32
    %c0_i32_0 = arith.constant 0 : i32
    return %arg0, %c0_i32 : i32, i32
  }
  func.func @transform_1(%arg0: i32) -> (i32, i32) {
    %c0_i32 = arith.constant 0 : i32
    %c0_i32_0 = arith.constant 0 : i32
    %c0_i32_1 = arith.constant 0 : i32
    return %c0_i32, %c0_i32_0 : i32, i32
  }
  func.func @transform_2(%arg0: i32) -> (i32, i32) {
    %c0_i32 = arith.constant 0 : i32
    %c0_i32_0 = arith.constant 0 : i32
    %c0_i32_1 = arith.constant 0 : i32
    return %c0_i32, %c0_i32_0 : i32, i32
  }
  func.func @transform_3(%arg0: i32) -> (i32, i32) {
    %c0_i32 = arith.constant 0 : i32
    %c0_i32_0 = arith.constant 0 : i32
    %c0_i32_1 = arith.constant 0 : i32
    return %c0_i32, %c0_i32_0 : i32, i32
  }
  func.func @transform_4(%arg0: i32) -> (i32, i32) {
    %c0_i32 = arith.constant 0 : i32
    %c0_i32_0 = arith.constant 0 : i32
    return %arg0, %c0_i32 : i32, i32
  }
}

</mosaic_0001>

<llo_original>
// kernel: tpu_custom_call.1
$region0: #{tpu_custom_call.1}
  #allocation0 [shape = 'u32[]', space=smem, size = 0x4, offset = 0x4, fixed_abs, tag = 'smem constant byte address 0x4 - core index']
  #allocation1 [shape = 'u32[144,128]{1,0:T(1,128)}', space=vmem, size = 0x12000, scoped, tag = 'internal scratch']
  %s0 = inlined_call_operand.vmem [shape: bf16[128,8], index: 0, kind: input, shape index: {}]
  %s1 = inlined_call_operand.vmem [shape: bf16[8,16], index: 1, kind: input, shape index: {}]
  %s2 = inlined_call_operand.vmem [shape: f32[1,16], index: 2, kind: input, shape index: {}]
  %s3 = inlined_call_operand.vmem [shape: f32[1,16], index: 3, kind: input, shape index: {}]
  %s4 = inlined_call_operand.vmem [shape: bf16[128,16], index: 4, kind: output, shape index: {}]
  %s5 = sld [smem:[#allocation0]]
  $region49: #{tpu_custom_call.1} parent=0
    _
  %s7 = ssub.s32 1, %s5
  %s8 = scalar_select 0, %s7, %s5
  loop: start=0, step=1, limit=4
  $region2: #{tpu_custom_call.1} parent=0 // loop_pre_header
    _
  $region3: #{tpu_custom_call.1} parent=0 // loop_header
    %s10 = sphi 0, %s14
    %p11 = scmp.ge.s32.totalorder %s10, 4
    %s20 = sphi 0, %s22
    %s23 = sphi 0, %s20
    %s24 = sphi 0, %s23
    %s40 = sphi 0, %s24
    %s44 = sphi 0, %s44
    %s46 = sphi 0, %s44
    %s47 = sphi 0, %s46
    %s61 = sphi 0, %s47
    %s65 = sphi 0, %s65
    %s67 = sphi 0, %s65
    %s68 = sphi 0, %s67
    %s82 = sphi 0, %s68
    %s86 = sphi 0, %s86
    %s88 = sphi 0, %s86
    %s89 = sphi 0, %s88
    %s103 = sphi 0, %s89
    %s109 = sphi 0, %s111
    %s112 = sphi 0, %s109
    %s113 = sphi 0, %s112
    %s129 = sphi 0, %s113
  $region4: #{tpu_custom_call.1} parent=0 // loop_header_branch
    %13 = sbr.rel (%p11) target = $region8
  $region5: #{tpu_custom_call.1} parent=0 // loop_body
    %s15 = ssub.s32 %s10, 1
    %s16 = ssub.s32 %s10, 2
    %s17 = sadd.s32 %s10, 1
    %s18 = ssub.s32 %s10, %s17
    %p19 = scmp.eq.s32.totalorder %s18, 0
    %s21 = sadd.s32 %s20, 1
    %s22 = scalar_select %p19, %s20, %s21
    %p25 = pneg %p19
    %p26 = scmp.eq.s32.totalorder %s10, 1
    %p27 = por %p25, %p26
    %p28 = scmp.ne.s32.totalorder %s20, %s23
    %p29 = scmp.eq.s32.totalorder %s10, 0
    %p30 = por %p28, %p29
    %p31 = scmp.ne.s32.totalorder %s20, %s23
    %p32 = scmp.eq.s32.totalorder %s15, 1
    %p33 = por %p31, %p32
    %p34 = scmp.ne.s32.totalorder %s23, %s24
    %p35 = scmp.eq.s32.totalorder %s15, 0
    %p36 = por %p34, %p35
    %p37 = scmp.ne.s32.totalorder %s23, %s24
    %p38 = scmp.eq.s32.totalorder %s16, 1
    %p39 = por %p37, %p38
    %p41 = scmp.ne.s32.totalorder %s24, %s40
    %p42 = scmp.eq.s32.totalorder %s16, 0
    %p43 = por %p41, %p42
    %s45 = sadd.s32 %s44, 1
    %p48 = scmp.eq.s32.totalorder %s10, 1
    %p49 = scmp.ne.s32.totalorder %s44, %s46
    %p50 = scmp.eq.s32.totalorder %s10, 0
    %p51 = por %p49, %p50
    %p52 = scmp.ne.s32.totalorder %s44, %s46
    %p53 = scmp.eq.s32.totalorder %s15, 1
    %p54 = por %p52, %p53
    %p55 = scmp.ne.s32.totalorder %s46, %s47
    %p56 = scmp.eq.s32.totalorder %s15, 0
    %p57 = por %p55, %p56
    %p58 = scmp.ne.s32.totalorder %s46, %s47
    %p59 = scmp.eq.s32.totalorder %s16, 1
    %p60 = por %p58, %p59
    %p62 = scmp.ne.s32.totalorder %s47, %s61
    %p63 = scmp.eq.s32.totalorder %s16, 0
    %p64 = por %p62, %p63
    %s66 = sadd.s32 %s65, 1
    %p69 = scmp.eq.s32.totalorder %s10, 1
    %p70 = scmp.ne.s32.totalorder %s65, %s67
    %p71 = scmp.eq.s32.totalorder %s10, 0
    %p72 = por %p70, %p71
    %p73 = scmp.ne.s32.totalorder %s65, %s67
    %p74 = scmp.eq.s32.totalorder %s15, 1
    %p75 = por %p73, %p74
    %p76 = scmp.ne.s32.totalorder %s67, %s68
    %p77 = scmp.eq.s32.totalorder %s15, 0
    %p78 = por %p76, %p77
    %p79 = scmp.ne.s32.totalorder %s67, %s68
    %p80 = scmp.eq.s32.totalorder %s16, 1
    %p81 = por %p79, %p80
    %p83 = scmp.ne.s32.totalorder %s68, %s82
    %p84 = scmp.eq.s32.totalorder %s16, 0
    %p85 = por %p83, %p84
    %s87 = sadd.s32 %s86, 1
    %p90 = scmp.eq.s32.totalorder %s10, 1
    %p91 = scmp.ne.s32.totalorder %s86, %s88
    %p92 = scmp.eq.s32.totalorder %s10, 0
    %p93 = por %p91, %p92
    %p94 = scmp.ne.s32.totalorder %s86, %s88
    %p95 = scmp.eq.s32.totalorder %s15, 1
    %p96 = por %p94, %p95
    %p97 = scmp.ne.s32.totalorder %s88, %s89
    %p98 = scmp.eq.s32.totalorder %s15, 0
    %p99 = por %p97, %p98
    %p100 = scmp.ne.s32.totalorder %s88, %s89
    %p101 = scmp.eq.s32.totalorder %s16, 1
    %p102 = por %p100, %p101
    %p104 = scmp.ne.s32.totalorder %s89, %s103
    %p105 = scmp.eq.s32.totalorder %s16, 0
    %p106 = por %p104, %p105
    %s107 = ssub.s32 %s10, %s17
    %p108 = scmp.eq.s32.totalorder %s107, 0
    %s110 = sadd.s32 %s109, 1
    %s111 = scalar_select %p108, %s109, %s110
    %p114 = pneg %p108
    %p115 = scmp.eq.s32.totalorder %s10, 1
    %p116 = por %p114, %p115
    %p117 = scmp.ne.s32.totalorder %s109, %s112
    %p118 = scmp.eq.s32.totalorder %s10, 0
    %p119 = por %p117, %p118
    %p120 = scmp.ne.s32.totalorder %s109, %s112
    %p121 = scmp.eq.s32.totalorder %s15, 1
    %p122 = por %p120, %p121
    %p123 = scmp.ne.s32.totalorder %s112, %s113
    %p124 = scmp.eq.s32.totalorder %s15, 0
    %p125 = por %p123, %p124
    %p126 = scmp.ne.s32.totalorder %s112, %s113
    %p127 = scmp.eq.s32.totalorder %s16, 1
    %p128 = por %p126, %p127
    %p130 = scmp.ne.s32.totalorder %s113, %s129
    %p131 = scmp.eq.s32.totalorder %s16, 0
    %p132 = por %p130, %p131
    %p133 = scmp.le.s32.totalorder 1, %s10
    %p134 = scmp.lt.s32.totalorder %s10, 3
    %p135 = pnand %p133, %p134
    %p136 = pneg %p135
    // Predicated region
    $region9: #{tpu_custom_call.1} parent=5 // pred_check
      _
    $region10: #{tpu_custom_call.1} parent=5 // pred_check_branch
      %138 = sbr.rel (%p135) target = $region12
    $region11: #{tpu_custom_call.1} parent=5 // pred_region
      %s139 = ssub.s32 %s10, 1
      // Predicated region
      $region13: #{tpu_custom_call.1} parent=11 // pred_check
        %p140 = pneg %p57
      $region14: #{tpu_custom_call.1} parent=11 // pred_check_branch
        %142 = sbr.rel (%p140) target = $region16
      $region15: #{tpu_custom_call.1} parent=11 // pred_region
        _
      $region16: #{tpu_custom_call.1} parent=11 // pred_fallthru
        _
      // Predicated region
      $region17: #{tpu_custom_call.1} parent=11 // pred_check
        %p143 = pneg %p78
      $region18: #{tpu_custom_call.1} parent=11 // pred_check_branch
        %145 = sbr.rel (%p143) target = $region20
      $region19: #{tpu_custom_call.1} parent=11 // pred_region
        _
      $region20: #{tpu_custom_call.1} parent=11 // pred_fallthru
        _
      // Predicated region
      $region21: #{tpu_custom_call.1} parent=11 // pred_check
        %p146 = pneg %p99
      $region22: #{tpu_custom_call.1} parent=11 // pred_check_branch
        %148 = sbr.rel (%p146) target = $region24
      $region23: #{tpu_custom_call.1} parent=11 // pred_region
        _
      $region24: #{tpu_custom_call.1} parent=11 // pred_fallthru
        _
    $region12: #{tpu_custom_call.1} parent=5 // pred_fallthru
      _
    %p149 = scmp.lt.s32.totalorder %s10, 2
    // Predicated region
    $region25: #{tpu_custom_call.1} parent=5 // pred_check
      %p150 = pneg %p149
    $region26: #{tpu_custom_call.1} parent=5 // pred_check_branch
      %152 = sbr.rel (%p150) target = $region28
    $region27: #{tpu_custom_call.1} parent=5 // pred_region
      // Predicated region
      $region29: #{tpu_custom_call.1} parent=27 // pred_check
        %p153 = pneg %p30
      $region30: #{tpu_custom_call.1} parent=27 // pred_check_branch
        %155 = sbr.rel (%p153) target = $region32
      $region31: #{tpu_custom_call.1} parent=27 // pred_region
        %s156 = smul.u32 8, %s10
        %p157 = scmp.lt.s32.totalorder %s156, 15
        %s158 = scalar_select %p157, %s156, 15
        %s159 = smul.addr %s158, 4
        %s160 = scalar_lea.vmem %s0, %s159
        %s161 = smul.u32 8, %s10
      $region32: #{tpu_custom_call.1} parent=27 // pred_fallthru
        _
    $region28: #{tpu_custom_call.1} parent=5 // pred_fallthru
      _
    %p162 = scmp.le.s32.totalorder 1, %s10
    %p163 = scmp.lt.s32.totalorder %s10, 3
    %p164 = pnand %p162, %p163
    %p165 = pneg %p164
    // Predicated region
    $region33: #{tpu_custom_call.1} parent=5 // pred_check
      _
    $region34: #{tpu_custom_call.1} parent=5 // pred_check_branch
      %167 = sbr.rel (%p164) target = $region36
    $region35: #{tpu_custom_call.1} parent=5 // pred_region
      %s168 = ssub.s32 %s10, 1
      %s169 = smul.u32 8, %s15
      %p170 = scmp.lt.s32.totalorder %s169, 15
      %s171 = scalar_select %p170, %s169, 15
      %s172 = smul.addr %s171, 4
      %s173 = scalar_lea.vmem %s0, %s172
      %p174 = pneg %p36
      %p175 = pneg %p33
      %p176 = pneg %p57
      %p177 = pneg %p54
      %p178 = pneg %p78
      %p179 = pneg %p75
      %p180 = pneg %p99
      %p181 = pneg %p96
      %p182 = pneg %p125
      %p183 = pneg %p122
      %s184 = smul.u32 8, %s15
      %p185 = scmp.lt.s32.totalorder %s184, 15
      %s186 = scalar_select %p185, %s184, 15
      %s187 = smul.addr %s186, 4
      %s188 = scalar_lea.vmem %s4, %s187
      %s189 = smul.u32 8, %s15
      %p190 = scmp.lt.s32.totalorder %s189, 15
      %s191 = scalar_select %p190, %s189, 15
      %s192 = smul.addr %s191, 4
      %s193 = scalar_lea.vmem %s0, %s192
      %s194 = smul.u32 8, %s15
      %s195 = smul.u32 8, %s15
      %p196 = scmp.lt.s32.totalorder %s195, 15
      %s197 = scalar_select %p196, %s195, 15
      %s198 = smul.addr %s197, 4
      %s199 = scalar_lea.vmem %s4, %s198
      %s200 = smul.u32 8, %s15
      %v202 = vld [vmem:[%s193] sm:$0xf]
      %v203 = vld [vmem:[%s193 + $0x4] sm:$0xf]
      %v204 = vld [vmem:[%s193 + $0x8] sm:$0xf]
      %v205 = vld [vmem:[%s193 + $0xc] sm:$0xf]
      %v206 = vld [vmem:[%s193 + $0x10] sm:$0xf]
      %v207 = vld [vmem:[%s193 + $0x14] sm:$0xf]
      %v208 = vld [vmem:[%s193 + $0x18] sm:$0xf]
      %v209 = vld [vmem:[%s193 + $0x1c] sm:$0xf]
      %v210 = vld [vmem:[%s1] sm:$0xf]
      %v219 = vunpack.c.l.b16 %v202
      %v220 = vunpack.c.l.b16 %v203
      %v221 = vunpack.c.l.b16 %v204
      %v222 = vunpack.c.l.b16 %v205
      %v223 = vunpack.c.l.b16 %v206
      %v224 = vunpack.c.l.b16 %v207
      %v225 = vunpack.c.l.b16 %v208
      %v226 = vunpack.c.l.b16 %v209
      %v227 = vpack.c.b16 %v220, %v219
      %v228 = vpack.c.b16 %v222, %v221
      %v229 = vpack.c.b16 %v224, %v223
      %v230 = vpack.c.b16 %v226, %v225
      %vm231 = vcmask 64512
      %v233 = vsel %vm231, %v227, 0
      %v236 = vsel %vm231, %v228, 0
      %v239 = vsel %vm231, %v229, 0
      %v242 = vsel %vm231, %v230, 0
      %vm244 = vcmask 1043456
      %v246 = vsel %vm244, %v210, 0
      %248 = vmatprep.subr.bf16.mxu0 0
      %249 = vmatpush1.bf16.msra.mxu0 %v246
      %250 = vmatprep.subr.bf16.mxu0 0
      %251 = vmatpush1.bf16.msra.mxu0 0
      %252 = vmatprep.subr.bf16.mxu0 0
      %253 = vmatpush1.bf16.msra.mxu0 0
      %254 = vmatprep.subr.bf16.mxu0 0
      %255 = vmatpush1.bf16.msra.mxu0 0
      %256 = vmatprep.subr.bf16.mxu0 0
      %257 = vmatpush1.bf16.msra.mxu0 0
      %258 = vmatprep.subr.bf16.mxu0 0
      %259 = vmatpush1.bf16.msra.mxu0 0
      %260 = vmatprep.subr.bf16.mxu0 0
      %261 = vmatpush1.bf16.msra.mxu0 0
      %262 = vmatprep.subr.bf16.mxu0 0
      %263 = vmatpush1.bf16.msra.mxu0 0
      %264 = vmatprep.subr.bf16.mxu0 0
      %265 = vmatpush1.bf16.msra.mxu0 0
      %266 = vmatprep.subr.bf16.mxu0 0
      %267 = vmatpush1.bf16.msra.mxu0 0
      %268 = vmatprep.subr.bf16.mxu0 0
      %269 = vmatpush1.bf16.msra.mxu0 0
      %270 = vmatprep.subr.bf16.mxu0 0
      %271 = vmatpush1.bf16.msra.mxu0 0
      %272 = vmatprep.subr.bf16.mxu0 0
      %273 = vmatpush1.bf16.msra.mxu0 0
      %274 = vmatprep.subr.bf16.mxu0 0
      %275 = vmatpush1.bf16.msra.mxu0 0
      %276 = vmatprep.subr.bf16.mxu0 0
      %277 = vmatpush1.bf16.msra.mxu0 0
      %278 = vmatprep.subr.bf16.mxu0 0
      %279 = vmatpush1.bf16.msra.mxu0 0
      %280 = vmatprep.mubr.bf16.mxu0 0
      %281 = vmatmul.mubr.bf16.gmra.mrb[0].mxu0 %v233
      %v282 = vpop.f32.mrb[0].mxu0
      %v283 = vadd.f32 0.0, %v282
      %v284 = vpop.f32.mrb[0].mxu0
      %v285 = vpop.f32.mrb[0].mxu0
      %v286 = vadd.f32 0.0, %v285
      %v287 = vpop.f32.mrb[0].mxu0
      %288 = vmatprep.mubr.bf16.mxu0 0
      %289 = vmatmul.mubr.bf16.gmra.mrb[0].mxu0 %v236
      %v290 = vpop.f32.mrb[0].mxu0
      %v291 = vadd.f32 0.0, %v290
      %v292 = vpop.f32.mrb[0].mxu0
      %v293 = vpop.f32.mrb[0].mxu0
      %v294 = vadd.f32 0.0, %v293
      %v295 = vpop.f32.mrb[0].mxu0
      %296 = vmatprep.mubr.bf16.mxu0 0
      %297 = vmatmul.mubr.bf16.gmra.mrb[0].mxu0 %v239
      %v298 = vpop.f32.mrb[0].mxu0
      %v299 = vadd.f32 0.0, %v298
      %v300 = vpop.f32.mrb[0].mxu0
      %v301 = vpop.f32.mrb[0].mxu0
      %v302 = vadd.f32 0.0, %v301
      %v303 = vpop.f32.mrb[0].mxu0
      %304 = vmatprep.mubr.bf16.mxu0 0
      %305 = vmatmul.mubr.bf16.gmra.mrb[0].mxu0 %v242
      %v306 = vpop.f32.mrb[0].mxu0
      %v307 = vadd.f32 0.0, %v306
      %v308 = vpop.f32.mrb[0].mxu0
      %v309 = vpop.f32.mrb[0].mxu0
      %v310 = vadd.f32 0.0, %v309
      %v311 = vpop.f32.mrb[0].mxu0
      %312 = vdwg.mxu0
      %v313 = vld [vmem:[%s2] sm:$0x1]
      %v315 = vlaneseq
      %v316 = vshrl.u32 %v315, 7
      %v317 = vsub.s32 0, %v316
      %v318 = vrot.slane %v313, %v317
      %v320 = vmul.f32 %v283, %v318
      %v321 = vmul.f32 %v286, %v318
      %v322 = vmul.f32 %v291, %v318
      %v323 = vmul.f32 %v294, %v318
      %v324 = vmul.f32 %v299, %v318
      %v325 = vmul.f32 %v302, %v318
      %v326 = vmul.f32 %v307, %v318
      %v327 = vmul.f32 %v310, %v318
      %v328 = vld [vmem:[%s3] sm:$0x1]
      %v330 = vlaneseq
      %v331 = vshrl.u32 %v330, 7
      %v332 = vsub.s32 0, %v331
      %v333 = vrot.slane %v328, %v332
      %v335 = vadd.f32 %v320, %v333
      %v336 = vadd.f32 %v321, %v333
      %v337 = vadd.f32 %v322, %v333
      %v338 = vadd.f32 %v323, %v333
      %v339 = vadd.f32 %v324, %v333
      %v340 = vadd.f32 %v325, %v333
      %v341 = vadd.f32 %v326, %v333
      %v342 = vadd.f32 %v327, %v333
      %v343 = vmax.f32 %v335, 0.0
      %v344 = vmax.f32 %v336, 0.0
      %v345 = vmax.f32 %v337, 0.0
      %v346 = vmax.f32 %v338, 0.0
      %v347 = vmax.f32 %v339, 0.0
      %v348 = vmax.f32 %v340, 0.0
      %v349 = vmax.f32 %v341, 0.0
      %v350 = vmax.f32 %v342, 0.0
      %v351 = vpack.c.bf16 %v344, %v343
      %v352 = vpack.c.bf16 %v346, %v345
      %v353 = vpack.c.bf16 %v348, %v347
      %v354 = vpack.c.bf16 %v350, %v349
      %v359 = vunpack.c.l.b16 %v351
      %v360 = vunpack.c.h.b16 %v351
      %v361 = vunpack.c.l.b16 %v352
      %v362 = vunpack.c.h.b16 %v352
      %v363 = vunpack.c.l.b16 %v353
      %v364 = vunpack.c.h.b16 %v353
      %v365 = vunpack.c.l.b16 %v354
      %v366 = vunpack.c.h.b16 %v354
      %v367 = vpack.c.b16 %v359, %v359
      %v368 = vpack.c.b16 %v360, %v360
      %v369 = vpack.c.b16 %v361, %v361
      %v370 = vpack.c.b16 %v362, %v362
      %v371 = vpack.c.b16 %v363, %v363
      %v372 = vpack.c.b16 %v364, %v364
      %v373 = vpack.c.b16 %v365, %v365
      %v374 = vpack.c.b16 %v366, %v366
      %vm383 = vcmask 125952
      %384 = vst.msk [vmem:[%s199] sm:$0xf] %vm383, %v367
      %385 = vst.msk [vmem:[%s199 + $0x4] sm:$0xf] %vm383, %v368
      %386 = vst.msk [vmem:[%s199 + $0x8] sm:$0xf] %vm383, %v369
      %387 = vst.msk [vmem:[%s199 + $0xc] sm:$0xf] %vm383, %v370
      %388 = vst.msk [vmem:[%s199 + $0x10] sm:$0xf] %vm383, %v371
      %389 = vst.msk [vmem:[%s199 + $0x14] sm:$0xf] %vm383, %v372
      %390 = vst.msk [vmem:[%s199 + $0x18] sm:$0xf] %vm383, %v373
      %391 = vst.msk [vmem:[%s199 + $0x1c] sm:$0xf] %vm383, %v374
      %s392 = smul.u32 8, %s15
      %p393 = scmp.lt.s32.totalorder %s392, 15
      %s394 = scalar_select %p393, %s392, 15
      %s395 = smul.addr %s394, 4
      %s396 = scalar_lea.vmem %s4, %s395
      // Predicated region
      $region37: #{tpu_custom_call.1} parent=35 // pred_check
        %p397 = pneg %p122
      $region38: #{tpu_custom_call.1} parent=35 // pred_check_branch
        %399 = sbr.rel (%p397) target = $region40
      $region39: #{tpu_custom_call.1} parent=35 // pred_region
        %s400 = smul.u32 8, %s15
      $region40: #{tpu_custom_call.1} parent=35 // pred_fallthru
        _
    $region36: #{tpu_custom_call.1} parent=5 // pred_fallthru
      _
    %p401 = scmp.le.s32.totalorder 2, %s10
    // Predicated region
    $region41: #{tpu_custom_call.1} parent=5 // pred_check
      %p402 = pneg %p401
    $region42: #{tpu_custom_call.1} parent=5 // pred_check_branch
      %404 = sbr.rel (%p402) target = $region44
    $region43: #{tpu_custom_call.1} parent=5 // pred_region
      %s405 = ssub.s32 %s10, 2
      // Predicated region
      $region45: #{tpu_custom_call.1} parent=43 // pred_check
        %p406 = pneg %p128
      $region46: #{tpu_custom_call.1} parent=43 // pred_check_branch
        %408 = sbr.rel (%p406) target = $region48
      $region47: #{tpu_custom_call.1} parent=43 // pred_region
        %s409 = smul.u32 8, %s16
        %p410 = scmp.lt.s32.totalorder %s409, 15
        %s411 = scalar_select %p410, %s409, 15
        %s412 = smul.addr %s411, 4
        %s413 = scalar_lea.vmem %s4, %s412
      $region48: #{tpu_custom_call.1} parent=43 // pred_fallthru
        _
    $region44: #{tpu_custom_call.1} parent=5 // pred_fallthru
      _
  $region6: #{tpu_custom_call.1} parent=0 // loop_footer
    %s14 = sadd.s32 1, %s10
  $region7: #{tpu_custom_call.1} parent=0 // loop_footer_branch
    %9 = sbr.rel target = $region3
  $region8: #{tpu_custom_call.1} parent=0 // loop_exit
    _

</llo_original>
